<compile_context>
chip_gen: v7x
topology: tpu7x:2x2x1
jax: 0.10.0
libtpu: 0.0.40
codegen_flags: <defaults>
</compile_context>

<pallas_src>
import functools

import jax
import jax.numpy as jnp
from jax.experimental import pallas as pl
from jax.experimental.pallas import tpu as pltpu


# --------------------------------------------------------------------------- #
# kernels
# --------------------------------------------------------------------------- #


def _lstm_gates(gates, c, hidden):
    """nn.LSTMCell gate math (gate order i, f, g, o); `gates` already includes biases."""
    # TODO(synk): gate slices are not 128-lane aligned for the small H used here; use
    # H % 128 == 0 (or 4 separate H-wide gate blocks) in production configs.
    i = jax.nn.sigmoid(gates[:, 0 * hidden:1 * hidden])
    f = jax.nn.sigmoid(gates[:, 1 * hidden:2 * hidden])
    g = jnp.tanh(gates[:, 2 * hidden:3 * hidden])
    o = jax.nn.sigmoid(gates[:, 3 * hidden:4 * hidden])
    c_new = f * c + i * g
    h_new = o * jnp.tanh(c_new)
    return h_new, c_new


def image_precompute_kernel(img3_ref, img2_ref, w_img_ref,
                            mask_o, avg_o, proj_o):
    """Per-sequence constants: box mask, masked-mean image features, projected image."""
    f32 = jnp.float32
    img3 = img3_ref[...]                                            # (B, N, F)
    maskf = (jnp.sum(jnp.abs(img3), axis=-1) > 0).astype(f32)       # (B, N)
    count = jnp.maximum(jnp.sum(maskf, axis=-1, keepdims=True), 1e-13)
    avg = jnp.sum(img3 * maskf[:, :, None], axis=1) / count         # (B, F)

    cdt = w_img_ref.dtype
    # image projection for BUTD attention: 2-D matmul on the (B*N, F) view (wrapper reshape)
    proj = jnp.dot(img2_ref[...].astype(cdt), w_img_ref[...],
                   preferred_element_type=f32)                      # (B*N, P)

    mask_o[...] = maskf
    avg_o[...] = avg
    proj_o[...] = proj


def updown_step_kernel(
    # states (aliased to outputs 0..5)
    h1_ref, c1_ref, he_ref, ce_ref, hd_ref, cd_ref,
    # per-step activations / per-sequence precompute
    tok_ref, avg_ref, img_ref, pimg_ref, mask_ref, eps_ref,
    # packed weights (bf16) and biases (f32), layout (in_features, out_features)
    w1_tok_ref, w1_img_ref, w1_h1_ref, b1_ref,
    w_hd_ref, w_h1n_ref, w_attv_ref,
    w_attd_ref, we_hh_ref, be_ref,
    wd_z_ref, bd_ref, w_head_ref, b_head_ref,
    # outputs
    h1_o, c1_o, he_o, ce_o, hd_o, cd_o, mean_o, logvar_o, attw_o,
    *, hidden_size, att_proj_size, z_space,
):
    H, P, Z = hidden_size, att_proj_size, z_space
    f32 = jnp.float32
    cdt = w1_tok_ref.dtype                            # MXU compute dtype (bf16)

    h1, c1 = h1_ref[...], c1_ref[...]
    he, ce = he_ref[...], ce_ref[...]
    hd, cd = hd_ref[...], cd_ref[...]

    def mm(x, w_ref):
        # (in, out) weights -> no in-kernel transpose; f32 accumulation on the MXU.
        return jnp.dot(x.astype(cdt), w_ref[...], preferred_element_type=f32)

    # Old decoder state feeds all three LSTM cells -> one fused matmul.
    hd_all = mm(hd, w_hd_ref)                         # (bb, 12H)
    hd_g1 = hd_all[:, 0 * H:4 * H]
    hd_ge = hd_all[:, 4 * H:8 * H]
    hd_gd = hd_all[:, 8 * H:12 * H]                   # already includes decoder W_hh

    # ---- attention LSTM: input = [tok, avg_img, h1, hd], hidden = h1 ----------
    gates1 = (mm(tok_ref[...], w1_tok_ref) + mm(avg_ref[...], w1_img_ref)
              + mm(h1, w1_h1_ref)                     # W_ih h1-chunk + W_hh merged
              + hd_g1 + b1_ref[...])
    h1_n, c1_n = _lstm_gates(gates1, c1, H)

    # New h1 feeds encoder gates, decoder gates and the attention query -> fused matmul.
    h1n_all = mm(h1_n, w_h1n_ref)                     # (bb, 8H + P)
    enc_h1 = h1n_all[:, 0:4 * H]
    dec_h1 = h1n_all[:, 4 * H:8 * H]
    proj_q = h1n_all[:, 8 * H:8 * H + P]              # (bb, P)

    # ---- BottomUpTopDown attention --------------------------------------------
    mask = mask_ref[...]                              # (bb, N) in {0, 1}
    act = jnp.tanh(pimg_ref[...] + proj_q[:, None, :])        # (bb, N, P), f32
    w_att_row = w_attv_ref[...]                               # (1, 1, P), f32
    # TODO(synk): for large P this cross-lane reduce could be folded into an MXU matvec
    # (act @ w_att) per the perf review; kept as a reduce for lowering robustness at tiny P.
    logits = jnp.sum(act * w_att_row, axis=-1)                # (bb, N)

    # allennlp-style masked softmax: softmax(logits*mask)*mask, renormalized.
    s = jax.nn.softmax(logits * mask, axis=-1) * mask
    attw = s / (jnp.sum(s, axis=-1, keepdims=True) + 1e-13)   # (bb, N)
    attended = jnp.sum(attw[:, :, None] * img_ref[...], axis=1)  # (bb, F)

    # Attended features feed encoder + decoder gates -> one fused matmul.
    att_all = mm(attended, w_attd_ref)                # (bb, 8H)
    att_ge = att_all[:, 0:4 * H]
    att_gd = att_all[:, 4 * H:8 * H]

    # ---- language encoder LSTM + VAE head (training path, sentiment_vae == 0) --
    gates_e = att_ge + enc_h1 + hd_ge + mm(he, we_hh_ref) + be_ref[...]
    he_n, ce_n = _lstm_gates(gates_e, ce, H)

    head = mm(he_n, w_head_ref) + b_head_ref[...]     # (bb, 2Z): fc_mean | fc_log_var
    mean = head[:, 0:Z]
    log_var = head[:, Z:2 * Z]
    z = eps_ref[...] * jnp.exp(0.5 * log_var) + mean  # eps * std + mean

    # ---- language decoder LSTM --------------------------------------------------
    gates_d = att_gd + dec_h1 + hd_gd + mm(z, wd_z_ref) + bd_ref[...]
    hd_n, cd_n = _lstm_gates(gates_d, cd, H)

    h1_o[...] = h1_n
    c1_o[...] = c1_n
    he_o[...] = he_n
    ce_o[...] = ce_n
    hd_o[...] = hd_n
    cd_o[...] = cd_n
    mean_o[...] = mean
    logvar_o[...] = log_var
    attw_o[...] = attw


# --------------------------------------------------------------------------- #
# wrappers
# --------------------------------------------------------------------------- #


def pack_params(params, *, image_feature_size, embedding_size, hidden_size,
                attention_projection_size, z_space, weight_dtype=jnp.bfloat16):
    """Convert PyTorch-convention parameters into the kernel layout (done once)."""
    F, E, H, P, Z = (image_feature_size, embedding_size, hidden_size,
                     attention_projection_size, z_space)
    wd = weight_dtype
    f32 = jnp.float32
    t = lambda w: jnp.asarray(w, f32).T                      # (out,in) -> (in,out)

    # attention LSTM: input = [tok(E), avg_img(F), h1(H), hd(H)], hidden = h1
    w_ih1 = t(params["w_ih1"])                               # (E+F+2H, 4H)
    w1_tok = w_ih1[:E]
    w1_img = w_ih1[E:E + F]
    w1_h1 = w_ih1[E + F:E + F + H] + t(params["w_hh1"])      # same state -> merge
    w1_hd = w_ih1[E + F + H:E + F + 2 * H]

    # language encoder LSTM: input = [attended(F), h1_new(H), hd(H)], hidden = h_encoder
    w_ihe = t(params["w_ihe"])                               # (F+2H, 4H)
    we_att = w_ihe[:F]
    we_h1 = w_ihe[F:F + H]
    we_hd = w_ihe[F + H:F + 2 * H]

    # language decoder LSTM: input = [attended(F), h1_new(H), hd(H), z(Z)], hidden = hd
    w_ihd = t(params["w_ihd"])                               # (F+2H+Z, 4H)
    wd_att = w_ihd[:F]
    wd_h1 = w_ihd[F:F + H]
    wd_hd = w_ihd[F + H:F + 2 * H] + t(params["w_hhd"])      # same state -> merge
    wd_z = w_ihd[F + 2 * H:F + 2 * H + Z]

    return {
        "w1_tok": w1_tok.astype(wd),
        "w1_img": w1_img.astype(wd),
        "w1_h1": w1_h1.astype(wd),
        "b1": jnp.asarray(params["b1"], f32),
        # old decoder state -> [attention | encoder | decoder(+W_hh)] gate blocks
        "w_hd_fused": jnp.concatenate([w1_hd, we_hd, wd_hd], axis=1).astype(wd),
        # new h1 -> [encoder gates | decoder gates | attention query projection]
        "w_h1n_fused": jnp.concatenate([we_h1, wd_h1, t(params["w_q"])],
                                       axis=1).astype(wd),
        # attention scoring vector, kept f32 and lane-shaped (1, 1, P)
        "w_att_vec": jnp.asarray(params["w_att"], f32).reshape(1, 1, P),
        "w_img_proj": t(params["w_img"]).astype(wd),         # (F, P), precompute only
        # attended image features -> [encoder gates | decoder gates]
        "w_attd_fused": jnp.concatenate([we_att, wd_att], axis=1).astype(wd),
        "we_hh": t(params["w_hhe"]).astype(wd),
        "be": jnp.asarray(params["be"], f32),
        "wd_z": wd_z.astype(wd),
        "bd": jnp.asarray(params["bd"], f32),
        # fc_mean / fc_log_var stacked into one (H, 2Z) head
        "w_head": jnp.concatenate([t(params["w_mean"]), t(params["w_lv"])],
                                  axis=1).astype(wd),
        "b_head": jnp.concatenate([jnp.asarray(params["b_mean"], f32),
                                   jnp.asarray(params["b_lv"], f32)], axis=1),
    }


def precompute_image_context(image_features, packed):
    """Once-per-sequence work (the PyTorch module lru_caches the equivalent)."""
    B, N, F = image_features.shape
    P = packed["w_img_proj"].shape[1]
    img2 = image_features.reshape(B * N, F)          # free XLA view of contiguous data
    vmem = pl.BlockSpec(memory_space=pltpu.MemorySpace.VMEM)
    maskf, avg_img, proj2 = pl.pallas_call(
        image_precompute_kernel,
        out_shape=(jax.ShapeDtypeStruct((B, N), jnp.float32),
                   jax.ShapeDtypeStruct((B, F), jnp.float32),
                   jax.ShapeDtypeStruct((B * N, P), jnp.float32)),
        in_specs=[vmem, vmem, vmem],
        out_specs=(vmem, vmem, vmem),
    )(image_features, img2, packed["w_img_proj"])
    return maskf, avg_img, proj2.reshape(B, N, P)    # wrapper-side reshape is free


def updown_cell_step(image_features, token_embedding, states, prior_mean, prior_var,
                     eps, packed, image_ctx, *, hidden_size, attention_projection_size,
                     z_space):
    """One UpDownCell decoding step (training path, sentiment_vae=0, glove latents)."""
    B, N, F = image_features.shape
    E = token_embedding.shape[1]
    H, P, Z = hidden_size, attention_projection_size, z_space
    f32 = jnp.float32
    maskf, avg_img, proj_img = image_ctx

    if states is None:
        zero = jnp.zeros((B, H), f32)
        states = {"h1": zero, "c1": zero, "h_encoder": zero, "c_encoder": zero,
                  "h_decoder": zero, "c_decoder": zero}

    # Batch grid ("parallel"): weights stay VMEM-resident, activations stream per block.
    bb = 128 if B % 128 == 0 else B
    grid = (B // bb,)

    def row_spec(cols):
        return pl.BlockSpec((bb, cols), lambda i: (i, 0))

    def box_spec(cols):
        return pl.BlockSpec((bb, N, cols), lambda i: (i, 0, 0))

    def weight_spec(arr):
        return pl.BlockSpec(arr.shape, lambda i: (0,) * arr.ndim)

    state_keys = ("h1", "c1", "h_encoder", "c_encoder", "h_decoder", "c_decoder")
    weights = (packed["w1_tok"], packed["w1_img"], packed["w1_h1"], packed["b1"],
               packed["w_hd_fused"], packed["w_h1n_fused"], packed["w_att_vec"],
               packed["w_attd_fused"], packed["we_hh"], packed["be"],
               packed["wd_z"], packed["bd"], packed["w_head"], packed["b_head"])
    inputs = tuple(states[k] for k in state_keys) + (
        token_embedding, avg_img, image_features, proj_img, maskf, eps) + weights

    in_specs = ([row_spec(H)] * 6
                + [row_spec(E), row_spec(F), box_spec(F), box_spec(P),
                   row_spec(N), row_spec(Z)]
                + [weight_spec(w) for w in weights])

    out_shape = (
        jax.ShapeDtypeStruct((B, H), f32),   # h1
        jax.ShapeDtypeStruct((B, H), f32),   # c1
        jax.ShapeDtypeStruct((B, H), f32),   # h_encoder
        jax.ShapeDtypeStruct((B, H), f32),   # c_encoder
        jax.ShapeDtypeStruct((B, H), f32),   # h_decoder
        jax.ShapeDtypeStruct((B, H), f32),   # c_decoder
        jax.ShapeDtypeStruct((B, Z), f32),   # mean
        jax.ShapeDtypeStruct((B, Z), f32),   # log_var
        jax.ShapeDtypeStruct((B, N), f32),   # attention weights
    )
    out_specs = tuple([row_spec(H)] * 6 + [row_spec(Z), row_spec(Z), row_spec(N)])

    kernel = functools.partial(updown_step_kernel, hidden_size=H,
                               att_proj_size=P, z_space=Z)
    outs = pl.pallas_call(
        kernel,
        grid=grid,
        out_shape=out_shape,
        in_specs=in_specs,
        out_specs=out_specs,
        input_output_aliases={i: i for i in range(6)},     # states update in place
        compiler_params=pltpu.CompilerParams(
            dimension_semantics=("parallel",),
            vmem_limit_bytes=48 * 1024 * 1024),
    )(*inputs)

    h1, c1, he, ce, hd, cd, mean, log_var, attw = outs
    new_states = {"h1": h1, "c1": c1, "h_encoder": he, "c_encoder": ce,
                  "h_decoder": hd, "c_decoder": cd}
    # prior_var.log() is trivial element-wise work on (B, Z): keep it out of the kernel.
    return hd, new_states, mean, log_var, prior_mean, jnp.log(prior_var), attw


# --------------------------------------------------------------------------- #
# setup / demo
# --------------------------------------------------------------------------- #


def _uniform(key, shape, scale):
    return jax.random.uniform(key, shape, jnp.float32, -scale, scale)


def init_params(key, image_feature_size, embedding_size, hidden_size,
                attention_projection_size, z_space):
    """PyTorch-convention parameters: (out_features, in_features) weights."""
    F, E, H, P, Z = (image_feature_size, embedding_size, hidden_size,
                     attention_projection_size, z_space)
    ks = jax.random.split(key, 20)
    k_lstm = 1.0 / (H ** 0.5)
    att_in = E + F + 2 * H
    enc_in = F + 2 * H
    dec_in = F + 2 * H + Z
    return {
        "w_ih1": _uniform(ks[0], (4 * H, att_in), k_lstm),
        "w_hh1": _uniform(ks[1], (4 * H, H), k_lstm),
        "b1": _uniform(ks[2], (1, 4 * H), k_lstm) + _uniform(ks[3], (1, 4 * H), k_lstm),
        "w_img": _uniform(ks[4], (P, F), 1.0 / (F ** 0.5)),
        "w_q": _uniform(ks[5], (P, H), 1.0 / (H ** 0.5)),
        "w_att": _uniform(ks[6], (1, P), 1.0 / (P ** 0.5)),
        "w_ihe": _uniform(ks[7], (4 * H, enc_in), k_lstm),
        "w_hhe": _uniform(ks[8], (4 * H, H), k_lstm),
        "be": _uniform(ks[9], (1, 4 * H), k_lstm) + _uniform(ks[10], (1, 4 * H), k_lstm),
        "w_ihd": _uniform(ks[11], (4 * H, dec_in), k_lstm),
        "w_hhd": _uniform(ks[12], (4 * H, H), k_lstm),
        "bd": _uniform(ks[13], (1, 4 * H), k_lstm) + _uniform(ks[14], (1, 4 * H), k_lstm),
        "w_mean": _uniform(ks[15], (Z, H), 1.0 / (H ** 0.5)),
        "b_mean": _uniform(ks[16], (1, Z), 1.0 / (H ** 0.5)),
        "w_lv": _uniform(ks[17], (Z, H), 1.0 / (H ** 0.5)),
        "b_lv": _uniform(ks[18], (1, Z), 1.0 / (H ** 0.5)),
    }


if __name__ == "__main__":
    B, N = 2, 8                 # batch, num_boxes
    F = 32                      # image_feature_size
    E = 16                      # embedding_size
    H = 32                      # hidden_size
    P = 32                      # attention_projection_size
    Z = 8                       # z_space

    root = jax.random.PRNGKey(0)
    k_img, k_tok, k_pm, k_pv, k_eps, k_par = jax.random.split(root, 6)

    image_features = jax.random.normal(k_img, (B, N, F), jnp.float32)
    # emulate adaptive features: zero-pad the last 3 boxes of the second instance
    pad_mask = jnp.concatenate(
        [jnp.ones((1, N, 1), jnp.float32),
         jnp.concatenate([jnp.ones((1, N - 3, 1), jnp.float32),
                          jnp.zeros((1, 3, 1), jnp.float32)], axis=1)], axis=0)
    image_features = image_features * pad_mask

    token_embedding = jax.random.normal(k_tok, (B, E), jnp.float32)
    prior_mean = jax.random.normal(k_pm, (B, Z), jnp.float32)
    prior_var = jax.random.uniform(k_pv, (B, Z), jnp.float32, 0.5, 1.5)
    # eps ~ N(0,1) (torch.randn in the module) is passed in explicitly.
    eps = jax.random.normal(k_eps, (B, Z), jnp.float32)

    params = init_params(k_par, F, E, H, P, Z)
    packed = pack_params(params, image_feature_size=F, embedding_size=E,
                         hidden_size=H, attention_projection_size=P, z_space=Z)

    # once per sequence (the PyTorch module lru_caches the equivalent work)
    image_ctx = precompute_image_context(image_features, packed)

    states = None
    for _ in range(2):          # two decode steps to exercise state threading / aliasing
        (h_dec, states, mean, log_var, pm_out, plv, attw) = updown_cell_step(
            image_features, token_embedding, states, prior_mean, prior_var, eps,
            packed, image_ctx, hidden_size=H, attention_projection_size=P, z_space=Z)

    out = jax.block_until_ready((h_dec, states, mean, log_var, pm_out, plv, attw))
    h_dec, states, mean, log_var, pm_out, plv, attw = out

    # light sanity checks
    assert h_dec.shape == (B, H) and mean.shape == (B, Z) and attw.shape == (B, N)
    assert bool(jnp.all(jnp.isfinite(h_dec)))
    assert bool(jnp.all(jnp.abs(jnp.sum(attw, axis=-1) - 1.0) < 1e-3))
    assert bool(jnp.all(attw[1, -3:] < 1e-6))       # padded boxes get ~zero attention
    assert bool(jnp.allclose(plv, jnp.log(prior_var)))

    print("KERNEL_OK")
</pallas_src>

<mosaic_0001>
module attributes {stable_mosaic.version = 11 : i64} {
  func.func @image_precompute_kernel(%arg0: memref<2x8x32xf32, #tpu.memory_space<vmem>>, %arg1: memref<16x32xf32, #tpu.memory_space<vmem>>, %arg2: memref<32x32xbf16, #tpu.memory_space<vmem>>, %arg3: memref<2x8xf32, #tpu.memory_space<vmem>>, %arg4: memref<2x32xf32, #tpu.memory_space<vmem>>, %arg5: memref<16x32xf32, #tpu.memory_space<vmem>>) attributes {dimension_semantics = [], scalar_prefetch = 0 : i64, scratch_operands = 0 : i64, tpu.core_type = #tpu.core_type<tc>} {
    %c0 = arith.constant 0 : index
    %c0_0 = arith.constant 0 : index
    %c0_1 = arith.constant 0 : index
    %0 = vector.load %arg0[%c0, %c0_0, %c0_1] : memref<2x8x32xf32, #tpu.memory_space<vmem>>, vector<2x8x32xf32>
    %1 = math.absf %0 : vector<2x8x32xf32>
    %cst = arith.constant dense<0.000000e+00> : vector<2x8xf32>
    %2 = vector.multi_reduction <add>, %1, %cst [2] : vector<2x8x32xf32> to vector<2x8xf32>
    %cst_2 = arith.constant 0.000000e+00 : f32
    %3 = vector.broadcast %cst_2 : f32 to vector<2x8xf32>
    %4 = arith.cmpf ogt, %2, %3 : vector<2x8xf32>
    %5 = arith.extui %4 : vector<2x8xi1> to vector<2x8xi32>
    %6 = arith.sitofp %5 : vector<2x8xi32> to vector<2x8xf32>
    %cst_3 = arith.constant dense<0.000000e+00> : vector<2xf32>
    %7 = vector.multi_reduction <add>, %6, %cst_3 [1] : vector<2x8xf32> to vector<2xf32>
    %8 = vector.shape_cast %7 : vector<2xf32> to vector<2x1xf32>
    %cst_4 = arith.constant 9.99999982E-14 : f32
    %9 = vector.broadcast %cst_4 : f32 to vector<2x1xf32>
    %10 = arith.maximumf %8, %9 : vector<2x1xf32>
    %11 = vector.shape_cast %6 : vector<2x8xf32> to vector<2x8x1xf32>
    %12 = vector.broadcast %11 : vector<2x8x1xf32> to vector<2x8x32xf32>
    %13 = arith.mulf %0, %12 : vector<2x8x32xf32>
    %cst_5 = arith.constant dense<0.000000e+00> : vector<2x32xf32>
    %14 = vector.multi_reduction <add>, %13, %cst_5 [1] : vector<2x8x32xf32> to vector<2x32xf32>
    %15 = vector.broadcast %10 : vector<2x1xf32> to vector<2x32xf32>
    %16 = arith.divf %14, %15 : vector<2x32xf32>
    %c0_6 = arith.constant 0 : index
    %c0_7 = arith.constant 0 : index
    %17 = vector.load %arg1[%c0_6, %c0_7] : memref<16x32xf32, #tpu.memory_space<vmem>>, vector<16x32xf32>
    %18 = arith.truncf %17 : vector<16x32xf32> to vector<16x32xbf16>
    %c0_8 = arith.constant 0 : index
    %c0_9 = arith.constant 0 : index
    %19 = vector.load %arg2[%c0_8, %c0_9] : memref<32x32xbf16, #tpu.memory_space<vmem>>, vector<32x32xbf16>
    %cst_10 = arith.constant dense<0.000000e+00> : vector<16x32xf32>
    %20 = tpu.matmul %18, %19, %cst_10 {dimension_numbers = #tpu.dot_dimension_numbers<[1], [0], [0], [1], [0, 0, 1, 1], [], []>} : vector<16x32xbf16>, vector<32x32xbf16>, vector<16x32xf32> -> vector<16x32xf32>
    %c0_11 = arith.constant 0 : index
    %c0_12 = arith.constant 0 : index
    %21 = vector.load %arg3[%c0_11, %c0_12] : memref<2x8xf32, #tpu.memory_space<vmem>>, vector<2x8xf32>
    tpu.vector_store %arg3[%c0_11, %c0_12], %6 {strides = array<i32>} : memref<2x8xf32, #tpu.memory_space<vmem>>, vector<2x8xf32>,
    %c0_13 = arith.constant 0 : index
    %c0_14 = arith.constant 0 : index
    %22 = vector.load %arg4[%c0_13, %c0_14] : memref<2x32xf32, #tpu.memory_space<vmem>>, vector<2x32xf32>
    tpu.vector_store %arg4[%c0_13, %c0_14], %16 {strides = array<i32>} : memref<2x32xf32, #tpu.memory_space<vmem>>, vector<2x32xf32>,
    %c0_15 = arith.constant 0 : index
    %c0_16 = arith.constant 0 : index
    %23 = vector.load %arg5[%c0_15, %c0_16] : memref<16x32xf32, #tpu.memory_space<vmem>>, vector<16x32xf32>
    tpu.vector_store %arg5[%c0_15, %c0_16], %20 {strides = array<i32>} : memref<16x32xf32, #tpu.memory_space<vmem>>, vector<16x32xf32>,
    return
  }
}

</mosaic_0001>

<llo_original>
// kernel: tpu_custom_call.1
$region0: #{tpu_custom_call.1}
  #allocation0 [shape = 'u32[]', space=smem, size = 0x4, offset = 0x4, fixed_abs, tag = 'smem constant byte address 0x4 - core index']
  #allocation1 [shape = 'u32[144,128]{1,0:T(1,128)}', space=vmem, size = 0x12000, scoped, tag = 'internal scratch']
  %s0 = inlined_call_operand.hbm [shape: f32[2,8,32], index: 0, kind: input, shape index: {}]
  %s1 = inlined_call_operand.hbm [shape: f32[16,32], index: 1, kind: input, shape index: {}]
  %s2 = inlined_call_operand.hbm [shape: bf16[32,32], index: 2, kind: input, shape index: {}]
  %s3 = inlined_call_operand.hbm [shape: f32[2,8], index: 3, kind: output, shape index: {0}]
  %s4 = inlined_call_operand.hbm [shape: f32[2,32], index: 4, kind: output, shape index: {1}]
  %s5 = inlined_call_operand.hbm [shape: f32[16,32], index: 5, kind: output, shape index: {2}]
  %6 = xla_tuple %s3, %s4, %s5
  %s7 = sld [smem:[#allocation0]]
  $region50: #{tpu_custom_call.1} parent=0
    _
  %s9 = ssub.s32 1, %s7
  %s10 = scalar_select 0, %s9, %s7
  $region1: #{tpu_custom_call.1} parent=0
    #allocation2 [shape = 'u8[8192]{0}', space=vmem, size = 0x2000, scoped, tag = 'input window, operand 0, single buffered']
    #allocation3 [shape = 's32[1]{0}', space=sflag, size = 0x4, scoped, tag = 'scoped memory for tpu_custom_call.1']
    #allocation4 [shape = 's32[1]{0}', space=sflag, size = 0x4, scoped, tag = 'scoped memory for tpu_custom_call.1']
    #allocation5 [shape = 'u8[8192]{0}', space=vmem, size = 0x2000, scoped, tag = 'input window, operand 1, single buffered']
    #allocation6 [shape = 's32[1]{0}', space=sflag, size = 0x4, scoped, tag = 'scoped memory for tpu_custom_call.1']
    #allocation7 [shape = 'u8[8192]{0}', space=vmem, size = 0x2000, scoped, tag = 'input window, operand 2, single buffered']
    #allocation8 [shape = 'u8[1024]{0}', space=vmem, size = 0x400, scoped, tag = 'output window, operand 0, single buffered']
    #allocation9 [shape = 'u8[1024]{0}', space=vmem, size = 0x400, scoped, tag = 'output window, operand 1, single buffered']
    #allocation10 [shape = 's32[1]{0}', space=sflag, size = 0x4, scoped, tag = 'scoped memory for tpu_custom_call.1']
    #allocation11 [shape = 'u8[8192]{0}', space=vmem, size = 0x2000, scoped, tag = 'output window, operand 2, single buffered']
    %11 = vsyncpa [#allocation3], 0
    %12 = vsyncpa [#allocation6], 0
    %13 = vsyncpa [#allocation4], 0
    %14 = vsyncpa [#allocation10], 0
    // Predicated region
    $region2: #{tpu_custom_call.1} parent=1 // pred_check
      _
    $region3: #{tpu_custom_call.1} parent=1 // pred_check_branch
      %16 = sbr.rel (0) target = $region5
    $region4: #{tpu_custom_call.1} parent=1 // pred_region
      %s18 = ssub.s32 256, 256
      %19 = vsyncadd [#allocation3], %s18
      %s20 = sshll.u32 [#allocation2], 4
      %s21 = int_to_ptr.vmem [resolvable:$true] %s20
      %26 = dma.hbm_to_vmem [thread:$0]  %s0, 256, %s21, [#allocation3], 128, 128, 8
    $region5: #{tpu_custom_call.1} parent=1 // pred_fallthru
      _
    // Predicated region
    $region6: #{tpu_custom_call.1} parent=1 // pred_check
      _
    $region7: #{tpu_custom_call.1} parent=1 // pred_check_branch
      %28 = sbr.rel (0) target = $region9
    $region8: #{tpu_custom_call.1} parent=1 // pred_region
      %s30 = ssub.s32 256, 256
      %31 = vsyncadd [#allocation6], %s30
      %s32 = sshll.u32 [#allocation5], 4
      %s33 = int_to_ptr.vmem [resolvable:$true] %s32
      %38 = dma.hbm_to_vmem [thread:$0]  %s1, 256, %s33, [#allocation6], 128, 128, 8
    $region9: #{tpu_custom_call.1} parent=1 // pred_fallthru
      _
    // Predicated region
    $region10: #{tpu_custom_call.1} parent=1 // pred_check
      _
    $region11: #{tpu_custom_call.1} parent=1 // pred_check_branch
      %40 = sbr.rel (0) target = $region13
    $region12: #{tpu_custom_call.1} parent=1 // pred_region
      %s42 = ssub.s32 256, 256
      %43 = vsyncadd [#allocation6], %s42
      %s44 = sshll.u32 [#allocation7], 4
      %s45 = int_to_ptr.vmem [resolvable:$true] %s44
      %50 = dma.hbm_to_vmem [thread:$0]  %s2, 256, %s45, [#allocation6], 64, 64, 4
    $region13: #{tpu_custom_call.1} parent=1 // pred_fallthru
      _
    // Predicated region
    $region14: #{tpu_custom_call.1} parent=1 // pred_check
      _
    $region15: #{tpu_custom_call.1} parent=1 // pred_check_branch
      %52 = sbr.rel (0) target = $region17
    $region16: #{tpu_custom_call.1} parent=1 // pred_region
      %53 = dma.done [#allocation3], 256
    $region17: #{tpu_custom_call.1} parent=1 // pred_fallthru
      _
    // Predicated region
    $region18: #{tpu_custom_call.1} parent=1 // pred_check
      _
    $region19: #{tpu_custom_call.1} parent=1 // pred_check_branch
      %55 = sbr.rel (0) target = $region21
    $region20: #{tpu_custom_call.1} parent=1 // pred_region
      %56 = dma.done [#allocation6], 256
    $region21: #{tpu_custom_call.1} parent=1 // pred_fallthru
      _
    // Predicated region
    $region22: #{tpu_custom_call.1} parent=1 // pred_check
      _
    $region23: #{tpu_custom_call.1} parent=1 // pred_check_branch
      %58 = sbr.rel (0) target = $region25
    $region24: #{tpu_custom_call.1} parent=1 // pred_region
      %59 = dma.done [#allocation6], 256
    $region25: #{tpu_custom_call.1} parent=1 // pred_fallthru
      _
    %v61 = vld [vmem:[#allocation2] sm:$0xff]
    %v62 = vld [vmem:[#allocation2 + $0x8] sm:$0xff]
    %v63 = vand.u32 2147483647, %v61
    %v64 = vand.u32 2147483647, %v62
    %vm65 = vcmask 261120
    %v66 = vsel %vm65, %v63, 0.0
    %67 = vadd.xlane.f32.xlu0 %v66
    %v68 = vpop.xlane.xlu0 %67
    %v69 = vsel %vm65, %v64, 0.0
    %70 = vadd.xlane.f32.xlu0 %v69
    %v71 = vpop.xlane.xlu0 %70
    %vm72 = vcmp.gt.f32.partialorder %v68, 0.0
    %vm73 = vcmp.gt.f32.partialorder %v71, 0.0
    %v74 = vsel %vm72, 1, 0
    %v75 = vsel %vm73, 1, 0
    %v76 = vcvt.s32.f32 %v74
    %v77 = vcvt.s32.f32 %v75
    %v80 = vlaneseq
    %v81 = vand.u32 %v80, 127
    %v82 = vlaneseq
    %v83 = vshrl.u32 %v82, 7
    %v84 = vsub.s32 %v81, %v83
    %v85 = vrot.slane %v76, %v84
    %v86 = vlaneseq
    %v87 = vshrl.u32 %v86, 7
    %v88 = vsub.s32 %v81, %v87
    %v89 = vrot.slane %v77, %v88
    %vm90 = vcmask 1041409
    %v91 = vsel %vm90, %v89, %v85
    %vm93 = vcmask 58368
    %v94 = vsel %vm93, %v91, 0.0
    %95 = vadd.xlane.f32.xlu0 %v94
    %v96 = vpop.xlane.xlu0 %95
    %v97 = vmax.f32 %v96, 1e-13
    %v98 = vmul.f32 %v61, %v76
    %v99 = vmul.f32 %v62, %v77
    %v100 = vsel %vm65, %v98, 0.0
    %v101 = vrot.slane %v100, 4
    %v102 = vadd.f32 %v100, %v101
    %v103 = vrot.slane %v102, 2
    %v104 = vadd.f32 %v102, %v103
    %v105 = vrot.slane %v104, 1
    %v106 = vadd.f32 %v104, %v105
    %v107 = vsel %vm65, %v99, 0.0
    %v108 = vrot.slane %v107, 4
    %v109 = vadd.f32 %v107, %v108
    %v110 = vrot.slane %v109, 2
    %v111 = vadd.f32 %v109, %v110
    %v112 = vrot.slane %v111, 1
    %v113 = vadd.f32 %v111, %v112
    %v115 = vrot.slane %v97, 1
    %v118 = vrcp.pop %v97
    %v119 = vmul.f32 %v106, %v118
    %v120 = vrcp.pop %v115
    %v121 = vmul.f32 %v113, %v120
    %v122 = vld [vmem:[#allocation5] sm:$0xff]
    %v123 = vld [vmem:[#allocation5 + $0x8] sm:$0xff]
    %v124 = vpack.c.bf16 %v123, %v122
    %v125 = vld [vmem:[#allocation7] sm:$0xf]
    %v126 = vld [vmem:[#allocation7 + $0x4] sm:$0xf]
    %v127 = vld [vmem:[#allocation7 + $0x8] sm:$0xf]
    %v128 = vld [vmem:[#allocation7 + $0xc] sm:$0xf]
    %v133 = vunpack.c.l.b16 %v125
    %v134 = vunpack.c.l.b16 %v126
    %v135 = vunpack.c.l.b16 %v127
    %v136 = vunpack.c.l.b16 %v128
    %v137 = vpack.c.b16 %v134, %v133
    %v138 = vpack.c.b16 %v136, %v135
    %v142 = vsel %vm65, %v124, 0
    %144 = vmatprep.subr.bf16.mxu0 0
    %145 = vmatpush1.bf16.msra.mxu0 %v137
    %146 = vmatprep.subr.bf16.mxu0 0
    %147 = vmatpush1.bf16.msra.mxu0 %v138
    %148 = vmatprep.subr.bf16.mxu0 0
    %149 = vmatpush1.bf16.msra.mxu0 0
    %150 = vmatprep.subr.bf16.mxu0 0
    %151 = vmatpush1.bf16.msra.mxu0 0
    %152 = vmatprep.subr.bf16.mxu0 0
    %153 = vmatpush1.bf16.msra.mxu0 0
    %154 = vmatprep.subr.bf16.mxu0 0
    %155 = vmatpush1.bf16.msra.mxu0 0
    %156 = vmatprep.subr.bf16.mxu0 0
    %157 = vmatpush1.bf16.msra.mxu0 0
    %158 = vmatprep.subr.bf16.mxu0 0
    %159 = vmatpush1.bf16.msra.mxu0 0
    %160 = vmatprep.subr.bf16.mxu0 0
    %161 = vmatpush1.bf16.msra.mxu0 0
    %162 = vmatprep.subr.bf16.mxu0 0
    %163 = vmatpush1.bf16.msra.mxu0 0
    %164 = vmatprep.subr.bf16.mxu0 0
    %165 = vmatpush1.bf16.msra.mxu0 0
    %166 = vmatprep.subr.bf16.mxu0 0
    %167 = vmatpush1.bf16.msra.mxu0 0
    %168 = vmatprep.subr.bf16.mxu0 0
    %169 = vmatpush1.bf16.msra.mxu0 0
    %170 = vmatprep.subr.bf16.mxu0 0
    %171 = vmatpush1.bf16.msra.mxu0 0
    %172 = vmatprep.subr.bf16.mxu0 0
    %173 = vmatpush1.bf16.msra.mxu0 0
    %174 = vmatprep.subr.bf16.mxu0 0
    %175 = vmatpush1.bf16.msra.mxu0 0
    %176 = vmatprep.mubr.bf16.mxu0 0
    %177 = vmatmul.mubr.bf16.gmra.mrb[0].mxu0 %v142
    %v178 = vpop.f32.mrb[0].mxu0
    %v179 = vadd.f32 0.0, %v178
    %v180 = vpop.f32.mrb[0].mxu0
    %v181 = vpop.f32.mrb[0].mxu0
    %v182 = vadd.f32 0.0, %v181
    %v183 = vpop.f32.mrb[0].mxu0
    %184 = vdwg.mxu0
    %185 = vst.msk [vmem:[#allocation8] sm:$0x3] %vm93, %v91
    %v188 = vrot.slane %v121, 7
    %v189 = vsel %vm90, %v188, %v119
    %vm191 = vcmask 254976
    %192 = vst.msk [vmem:[#allocation9] sm:$0x3] %vm191, %v189
    %193 = vst.msk [vmem:[#allocation11] sm:$0xff] %vm65, %v179
    %194 = vst.msk [vmem:[#allocation11 + $0x8] sm:$0xff] %vm65, %v182
    // Predicated region
    $region26: #{tpu_custom_call.1} parent=1 // pred_check
      _
    $region27: #{tpu_custom_call.1} parent=1 // pred_check_branch
      %196 = sbr.rel (0) target = $region29
    $region28: #{tpu_custom_call.1} parent=1 // pred_region
      %s198 = ssub.s32 32, 32
      %199 = vsyncadd [#allocation4], %s198
      %s201 = sshll.u32 [#allocation8], 4
      %s202 = int_to_ptr.vmem [resolvable:$true] %s201
      %204 = dma.vmem_to_hbm [thread:$0]  %s202, 32, %s3, [#allocation4]
    $region29: #{tpu_custom_call.1} parent=1 // pred_fallthru
      _
    // Predicated region
    $region30: #{tpu_custom_call.1} parent=1 // pred_check
      _
    $region31: #{tpu_custom_call.1} parent=1 // pred_check_branch
      %206 = sbr.rel (0) target = $region33
    $region32: #{tpu_custom_call.1} parent=1 // pred_region
      %s208 = ssub.s32 32, 32
      %209 = vsyncadd [#allocation10], %s208
      %s211 = sshll.u32 [#allocation9], 4
      %s212 = int_to_ptr.vmem [resolvable:$true] %s211
      %214 = dma.vmem_to_hbm [thread:$0]  %s212, 32, %s4, [#allocation10]
    $region33: #{tpu_custom_call.1} parent=1 // pred_fallthru
      _
    // Predicated region
    $region34: #{tpu_custom_call.1} parent=1 // pred_check
      _
    $region35: #{tpu_custom_call.1} parent=1 // pred_check_branch
      %216 = sbr.rel (0) target = $region37
    $region36: #{tpu_custom_call.1} parent=1 // pred_region
      %s218 = ssub.s32 256, 256
      %219 = vsyncadd [#allocation10], %s218
      %s220 = sshll.u32 [#allocation11], 4
      %s221 = int_to_ptr.vmem [resolvable:$true] %s220
      %226 = dma.vmem_to_hbm [thread:$0]  %s221, 256, %s5, [#allocation10], 128, 128, 8
    $region37: #{tpu_custom_call.1} parent=1 // pred_fallthru
      _
    // Predicated region
    $region38: #{tpu_custom_call.1} parent=1 // pred_check
      _
    $region39: #{tpu_custom_call.1} parent=1 // pred_check_branch
      %228 = sbr.rel (0) target = $region41
    $region40: #{tpu_custom_call.1} parent=1 // pred_region
      %229 = dma.done [#allocation4], 32
    $region41: #{tpu_custom_call.1} parent=1 // pred_fallthru
      _
    // Predicated region
    $region42: #{tpu_custom_call.1} parent=1 // pred_check
      _
    $region43: #{tpu_custom_call.1} parent=1 // pred_check_branch
      %231 = sbr.rel (0) target = $region45
    $region44: #{tpu_custom_call.1} parent=1 // pred_region
      %232 = dma.done [#allocation10], 32
    $region45: #{tpu_custom_call.1} parent=1 // pred_fallthru
      _
    // Predicated region
    $region46: #{tpu_custom_call.1} parent=1 // pred_check
      _
    $region47: #{tpu_custom_call.1} parent=1 // pred_check_branch
      %234 = sbr.rel (0) target = $region49
    $region48: #{tpu_custom_call.1} parent=1 // pred_region
      %235 = dma.done [#allocation10], 256
    $region49: #{tpu_custom_call.1} parent=1 // pred_fallthru
      _
    %236 = vsyncpa [#allocation3], 1
    %237 = vsyncpa [#allocation6], 1
    %238 = vsyncpa [#allocation4], 1
    %239 = vsyncpa [#allocation10], 1

</llo_original>
